<compile_context>
chip_gen: v6e
topology: v6e:2x2x1
jax: 0.10.0
libtpu: 0.0.40
codegen_flags: <defaults>
</compile_context>

<pallas_src>
import functools

import jax
import jax.numpy as jnp
from jax import lax
from jax.experimental import pallas as pl
from jax.experimental.pallas import tpu as pltpu


def _round_up(x: int, m: int) -> int:
    return ((x + m - 1) // m) * m


def _vmem_budget_bytes() -> int:
    """Budget for live streamed blocks + temporaries. Safe on every generation."""
    budget = 40 << 20                       # v7x: 64 MiB / TensorCore -> stay well under
    try:
        cap = pltpu.get_tpu_info().vmem_capacity_bytes
        if cap >= (96 << 20):               # v5e / v6e: 128 MiB physical VMEM
            budget = 72 << 20
    except Exception:
        pass
    return budget


def _choose_b_tile(B: int, D: int, in_itemsize: int, budget: int):
    """VMEM-aware batch-tile selection.

    Per-row cost of one grid step:
      lhs+rhs streamed, double-buffered : 2 inputs * 2 bufs * D * itemsize
      fp32 temporaries (diff, att*w2, prod) ~ 3 * 4 * D
      categories+labels (b_tile, 1) blocks lane-pad to 128 lanes:
          2 arrays * 2 bufs * 128 * 4 B = 2048 B / row
    """
    per_row = 2 * 2 * D * in_itemsize + 3 * 4 * D + 2 * 2 * 128 * 4
    bt = max(8, (budget // per_row) // 8 * 8)     # sublane multiple of 8
    bt = min(bt, 8192)                            # keep per-input blocks ~2-4 MiB
    # Keep >= ~8 grid blocks when B allows (v7x megacore + pipeline depth).
    bt = min(bt, max(8, _round_up(pl.cdiv(B, 8), 8)))
    bt = min(bt, _round_up(B, 8))
    return int(bt), per_row


def _siamese_loss_kernel(lhs_ref, rhs_ref, cat_ref, labels_ref,
                         table_ref, b2_ref, out_ref,
                         *, total_rows: int, block_rows: int):
    i = pl.program_id(0)

    # embeddings_diff = |lhs - rhs|  (cast in-kernel; inputs may be bf16 in HBM)
    lhs = lhs_ref[...].astype(jnp.float32)
    rhs = rhs_ref[...].astype(jnp.float32)
    diff = jnp.abs(lhs - rhs)                                          # (bt, D)
    bt = diff.shape[0]
    C = table_ref.shape[0]

    # one_hot(categories, C): iota compare on the VPU.
    onehot = (lax.broadcasted_iota(jnp.int32, (bt, C), 1)
              == cat_ref[...]).astype(jnp.float32)                     # (bt, C)

    # Folded multi_cat_linear + output Linear weight:
    #   table[c] = relu(W1[c] + b1) * w2   (precomputed in the wrapper)
    # One tiny MXU matmul selects the per-row table entry.
    att_w2 = jnp.dot(onehot, table_ref[...],
                     preferred_element_type=jnp.float32)               # (bt, D)

    # output_similarity (Dropout identity in eval): lane reduce + bias.
    logits = (jnp.sum(diff * att_w2, axis=-1, keepdims=True)
              + b2_ref[...])                                           # (bt, 1)

    # BCEWithLogitsLoss per element (numerically stable form).
    y = labels_ref[...].astype(jnp.float32)
    per_elem = (jnp.maximum(logits, 0.0) - logits * y
                + jnp.log1p(jnp.exp(-jnp.abs(logits))))                # (bt, 1)

    # Single tail mask: garbage rows of the overhanging final block contribute 0.
    row_ids = i * block_rows + lax.broadcasted_iota(jnp.int32, (bt, 1), 0)
    partial = jnp.sum(jnp.where(row_ids < total_rows, per_elem, 0.0))

    # Lane-dense (8, 128) output tile carrying this block's partial sum.
    out_ref[...] = jnp.full(out_ref.shape, partial, dtype=jnp.float32)


def multi_categorical_siamese_loss(lhs, rhs, categories, labels, w1, b1, w2, b2,
                                   *, b_tile=None):
    """lhs, rhs: (B, D) (fp32 or bf16); categories: (B,) int; labels: (B,).
    w1: (C, D)  (transposed nn.Linear weight), b1: (D,)
    w2: (D,)    (nn.Linear(D, 1) weight row),  b2: ()  -> scalar loss."""
    B, D = lhs.shape
    C = w1.shape[0]

    in_itemsize = max(jnp.dtype(lhs.dtype).itemsize, jnp.dtype(rhs.dtype).itemsize)
    budget = _vmem_budget_bytes()
    auto_bt, per_row = _choose_b_tile(B, D, in_itemsize, budget)
    if b_tile is None:
        b_tile = auto_bt
    else:
        b_tile = max(8, min(_round_up(int(b_tile), 8), _round_up(B, 8)))
    num_blocks = pl.cdiv(B, b_tile)

    # Fold the two Linears: table[c] = relu(W1[c] + b1) * w2   (shape (C, D), fp32).
    # NOTE: identical to the reference for valid ids (F.one_hot rejects out-of-range);
    # an out-of-range id would give att = relu(b1) in the original vs 0 here.
    table = (jnp.maximum(w1.astype(jnp.float32) + b1.astype(jnp.float32)[None, :], 0.0)
             * w2.astype(jnp.float32)[None, :])
    b2_2d = b2.astype(jnp.float32).reshape(1, 1)

    cat2d = categories.reshape(B, 1).astype(jnp.int32)
    lab2d = labels.reshape(B, 1)

    # Always set the scoped-VMEM limit explicitly (default 16/32 MiB can cap tiles).
    est_vmem = per_row * b_tile + table.size * 4 + (1 << 20)
    vmem_limit = int(max(32 << 20, min(budget + (8 << 20), 2 * est_vmem)))

    kernel = functools.partial(_siamese_loss_kernel,
                               total_rows=B, block_rows=b_tile)

    partials = pl.pallas_call(
        kernel,
        out_shape=jax.ShapeDtypeStruct((num_blocks, 8, 128), jnp.float32),
        grid=(num_blocks,),
        in_specs=[
            pl.BlockSpec((b_tile, D), lambda i: (i, 0)),   # lhs   (streamed)
            pl.BlockSpec((b_tile, D), lambda i: (i, 0)),   # rhs   (streamed)
            pl.BlockSpec((b_tile, 1), lambda i: (i, 0)),   # categories
            pl.BlockSpec((b_tile, 1), lambda i: (i, 0)),   # labels
            pl.BlockSpec((C, D), lambda i: (0, 0)),        # folded table (VMEM-resident)
            pl.BlockSpec((1, 1), lambda i: (0, 0)),        # b2
        ],
        out_specs=pl.BlockSpec((1, 8, 128), lambda i: (i, 0, 0)),
        compiler_params=pltpu.CompilerParams(
            dimension_semantics=("parallel",),
            vmem_limit_bytes=vmem_limit),
    )(lhs, rhs, cat2d, lab2d, table, b2_2d)

    # Per-block partial sums -> mean over the true batch size (tiny host-side reduce).
    return jnp.sum(partials[:, 0, 0]) / B


def _reference(lhs, rhs, categories, labels, w1, b1, w2, b2):
    # Exact fp32 elementwise reference (no matmul precision ambiguity).
    diff = jnp.abs(lhs.astype(jnp.float32) - rhs.astype(jnp.float32))
    att = jax.nn.relu(w1[categories].astype(jnp.float32) + b1.astype(jnp.float32))
    logits = jnp.sum(diff * att * w2.astype(jnp.float32), axis=-1) + b2
    y = labels.astype(jnp.float32)
    loss = (jnp.maximum(logits, 0.0) - logits * y
            + jnp.log1p(jnp.exp(-jnp.abs(logits))))
    return jnp.mean(loss)


if __name__ == "__main__":
    B = 20                     # batch of sentence pairs (not a multiple of the tile)
    D = 128                    # sentence_embedding_dimension
    C = 8                      # num_classes

    key = jax.random.PRNGKey(0)
    k_lhs, k_rhs, k_cat, k_lab, k_w1, k_b1, k_w2, k_b2 = jax.random.split(key, 8)

    lhs = jax.random.normal(k_lhs, (B, D), dtype=jnp.float32)
    rhs = jax.random.normal(k_rhs, (B, D), dtype=jnp.float32)
    categories = jax.random.randint(k_cat, (B,), 0, C, dtype=jnp.int32)
    labels = jax.random.bernoulli(k_lab, 0.5, (B,)).astype(jnp.float32)

    # Deterministic parameter init (nn.Linear-style uniform +-1/sqrt(fan_in))
    w1 = jax.random.uniform(k_w1, (C, D), jnp.float32, -1.0, 1.0) / jnp.sqrt(C)
    b1 = jax.random.uniform(k_b1, (D,), jnp.float32, -1.0, 1.0) / jnp.sqrt(C)
    w2 = jax.random.uniform(k_w2, (D,), jnp.float32, -1.0, 1.0) / jnp.sqrt(D)
    b2 = jax.random.uniform(k_b2, (), jnp.float32, -1.0, 1.0) / jnp.sqrt(D)

    # fp32 path: auto-derived tile (-> 8 rows/block at B=20) exercises the
    # multi-block grid + tail masking.
    loss = jax.block_until_ready(
        multi_categorical_siamese_loss(lhs, rhs, categories, labels, w1, b1, w2, b2))
    ref = _reference(lhs, rhs, categories, labels, w1, b1, w2, b2)
    assert jnp.allclose(loss, ref, atol=2e-5, rtol=2e-5), (loss, ref)

    # bf16-streaming path: halves HBM traffic; the fp32 cast happens in-kernel.
    lhs_bf, rhs_bf = lhs.astype(jnp.bfloat16), rhs.astype(jnp.bfloat16)
    loss_bf = jax.block_until_ready(
        multi_categorical_siamese_loss(lhs_bf, rhs_bf, categories, labels,
                                       w1, b1, w2, b2, b_tile=16))
    ref_bf = _reference(lhs_bf, rhs_bf, categories, labels, w1, b1, w2, b2)
    assert jnp.allclose(loss_bf, ref_bf, atol=2e-5, rtol=2e-5), (loss_bf, ref_bf)

    print("KERNEL_OK")
</pallas_src>

<mosaic_0001>
module attributes {stable_mosaic.version = 11 : i64} {
  func.func @_siamese_loss_kernel(%arg0: i32, %arg1: memref<8x128xf32, #tpu.memory_space<vmem>>, %arg2: memref<8x128xf32, #tpu.memory_space<vmem>>, %arg3: memref<8x1xi32, #tpu.memory_space<vmem>>, %arg4: memref<8x1xf32, #tpu.memory_space<vmem>>, %arg5: memref<8x128xf32, #tpu.memory_space<vmem>>, %arg6: memref<1x1xf32, #tpu.memory_space<vmem>>, %arg7: memref<1x8x128xf32, #tpu.memory_space<vmem>>) attributes {dimension_semantics = [#tpu.dimension_semantics<parallel>], iteration_bounds = array<i64: 3>, scalar_prefetch = 0 : i64, scratch_operands = 0 : i64, tpu.core_type = #tpu.core_type<tc>, window_params = [{transform_indices = @transform_0, window_bounds = array<i64: 8, 128>}, {transform_indices = @transform_1, window_bounds = array<i64: 8, 128>}, {transform_indices = @transform_2, window_bounds = array<i64: 8, 1>}, {transform_indices = @transform_3, window_bounds = array<i64: 8, 1>}, {pipeline_mode = #tpu.pipeline_mode<synchronous>, transform_indices = @transform_4, window_bounds = array<i64: 8, 128>}, {pipeline_mode = #tpu.pipeline_mode<synchronous>, transform_indices = @transform_5, window_bounds = array<i64: 1, 1>}, {transform_indices = @transform_6, window_bounds = array<i64: 1, 8, 128>}]} {
    %c0 = arith.constant 0 : index
    %c0_0 = arith.constant 0 : index
    %0 = vector.load %arg1[%c0, %c0_0] : memref<8x128xf32, #tpu.memory_space<vmem>>, vector<8x128xf32>
    %c0_1 = arith.constant 0 : index
    %c0_2 = arith.constant 0 : index
    %1 = vector.load %arg2[%c0_1, %c0_2] : memref<8x128xf32, #tpu.memory_space<vmem>>, vector<8x128xf32>
    %2 = arith.subf %0, %1 : vector<8x128xf32>
    %3 = math.absf %2 : vector<8x128xf32>
    %4 = tpu.iota {dimensions = array<i32: 1>} : vector<8x8xi32>
    %c0_3 = arith.constant 0 : index
    %c0_4 = arith.constant 0 : index
    %5 = vector.load %arg3[%c0_3, %c0_4] : memref<8x1xi32, #tpu.memory_space<vmem>>, vector<8x1xi32>
    %6 = vector.broadcast %5 : vector<8x1xi32> to vector<8x8xi32>
    %7 = arith.cmpi eq, %4, %6 : vector<8x8xi32>
    %8 = arith.extui %7 : vector<8x8xi1> to vector<8x8xi32>
    %9 = arith.sitofp %8 : vector<8x8xi32> to vector<8x8xf32>
    %c0_5 = arith.constant 0 : index
    %c0_6 = arith.constant 0 : index
    %10 = vector.load %arg5[%c0_5, %c0_6] : memref<8x128xf32, #tpu.memory_space<vmem>>, vector<8x128xf32>
    %cst = arith.constant dense<0.000000e+00> : vector<8x128xf32>
    %11 = tpu.matmul %9, %10, %cst {dimension_numbers = #tpu.dot_dimension_numbers<[1], [0], [0], [1], [0, 0, 1, 1], [], []>} : vector<8x8xf32>, vector<8x128xf32>, vector<8x128xf32> -> vector<8x128xf32>
    %12 = arith.mulf %3, %11 : vector<8x128xf32>
    %cst_7 = arith.constant dense<0.000000e+00> : vector<8xf32>
    %13 = vector.multi_reduction <add>, %12, %cst_7 [1] : vector<8x128xf32> to vector<8xf32>
    %14 = vector.shape_cast %13 : vector<8xf32> to vector<8x1xf32>
    %c0_8 = arith.constant 0 : index
    %c0_9 = arith.constant 0 : index
    %15 = vector.load %arg6[%c0_8, %c0_9] : memref<1x1xf32, #tpu.memory_space<vmem>>, vector<1x1xf32>
    %16 = vector.broadcast %15 : vector<1x1xf32> to vector<8x1xf32>
    %17 = arith.addf %14, %16 : vector<8x1xf32>
    %c0_10 = arith.constant 0 : index
    %c0_11 = arith.constant 0 : index
    %18 = vector.load %arg4[%c0_10, %c0_11] : memref<8x1xf32, #tpu.memory_space<vmem>>, vector<8x1xf32>
    %cst_12 = arith.constant 0.000000e+00 : f32
    %19 = vector.broadcast %cst_12 : f32 to vector<8x1xf32>
    %20 = arith.maximumf %17, %19 : vector<8x1xf32>
    %21 = arith.mulf %17, %18 : vector<8x1xf32>
    %22 = arith.subf %20, %21 : vector<8x1xf32>
    %23 = math.absf %17 : vector<8x1xf32>
    %cst_13 = arith.constant 0.000000e+00 : f32
    %24 = vector.broadcast %cst_13 : f32 to vector<8x1xf32>
    %25 = arith.subf %24, %23 : vector<8x1xf32>
    %26 = math.exp %25 : vector<8x1xf32>
    %27 = math.log1p %26 : vector<8x1xf32>
    %28 = arith.addf %22, %27 : vector<8x1xf32>
    %c8_i32 = arith.constant 8 : i32
    %29 = arith.muli %arg0, %c8_i32 : i32
    %30 = tpu.iota {dimensions = array<i32: 0>} : vector<8x1xi32>
    %31 = vector.broadcast %29 : i32 to vector<8x1xi32>
    %32 = arith.addi %31, %30 : vector<8x1xi32>
    %c20_i32 = arith.constant 20 : i32
    %33 = vector.broadcast %c20_i32 : i32 to vector<8x1xi32>
    %34 = arith.cmpi slt, %32, %33 : vector<8x1xi32>
    %cst_14 = arith.constant 0.000000e+00 : f32
    %35 = vector.broadcast %cst_14 : f32 to vector<8x1xf32>
    %36 = arith.select %34, %28, %35 : vector<8x1xi1>, vector<8x1xf32>
    %37 = vector.shape_cast %36 : vector<8x1xf32> to vector<1x8x1xf32>
    %cst_15 = arith.constant dense<0.000000e+00> : vector<1xf32>
    %38 = vector.multi_reduction <add>, %37, %cst_15 [1, 2] : vector<1x8x1xf32> to vector<1xf32>
    %39 = vector.shape_cast %38 : vector<1xf32> to vector<1x1x1xf32>
    %40 = vector.extract %39[0, 0, 0] : f32 from vector<1x1x1xf32>
    %41 = vector.broadcast %40 : f32 to vector<1x8x128xf32>
    %c0_16 = arith.constant 0 : index
    %c0_17 = arith.constant 0 : index
    %c0_18 = arith.constant 0 : index
    %42 = vector.load %arg7[%c0_16, %c0_17, %c0_18] : memref<1x8x128xf32, #tpu.memory_space<vmem>>, vector<1x8x128xf32>
    tpu.vector_store %arg7[%c0_16, %c0_17, %c0_18], %41 {strides = array<i32>} : memref<1x8x128xf32, #tpu.memory_space<vmem>>, vector<1x8x128xf32>,
    return
  }
  func.func @transform_0(%arg0: i32) -> (i32, i32) {
    %c0_i32 = arith.constant 0 : i32
    %c0_i32_0 = arith.constant 0 : i32
    return %arg0, %c0_i32 : i32, i32
  }
  func.func @transform_1(%arg0: i32) -> (i32, i32) {
    %c0_i32 = arith.constant 0 : i32
    %c0_i32_0 = arith.constant 0 : i32
    return %arg0, %c0_i32 : i32, i32
  }
  func.func @transform_2(%arg0: i32) -> (i32, i32) {
    %c0_i32 = arith.constant 0 : i32
    %c0_i32_0 = arith.constant 0 : i32
    return %arg0, %c0_i32 : i32, i32
  }
  func.func @transform_3(%arg0: i32) -> (i32, i32) {
    %c0_i32 = arith.constant 0 : i32
    %c0_i32_0 = arith.constant 0 : i32
    return %arg0, %c0_i32 : i32, i32
  }
  func.func @transform_4(%arg0: i32) -> (i32, i32) {
    %c0_i32 = arith.constant 0 : i32
    %c0_i32_0 = arith.constant 0 : i32
    %c0_i32_1 = arith.constant 0 : i32
    return %c0_i32, %c0_i32_0 : i32, i32
  }
  func.func @transform_5(%arg0: i32) -> (i32, i32) {
    %c0_i32 = arith.constant 0 : i32
    %c0_i32_0 = arith.constant 0 : i32
    %c0_i32_1 = arith.constant 0 : i32
    return %c0_i32, %c0_i32_0 : i32, i32
  }
  func.func @transform_6(%arg0: i32) -> (i32, i32, i32) {
    %c0_i32 = arith.constant 0 : i32
    %c0_i32_0 = arith.constant 0 : i32
    %c0_i32_1 = arith.constant 0 : i32
    return %arg0, %c0_i32, %c0_i32_0 : i32, i32, i32
  }
}

</mosaic_0001>

<llo_original>
// kernel: tpu_custom_call.1
$region0: #{tpu_custom_call.1}
  #allocation0 [shape = 'u32[]', space=smem, size = 0x4, offset = 0x4, fixed_abs, tag = 'smem constant byte address 0x4 - core index']
  #allocation1 [shape = 'u32[144,128]{1,0:T(1,128)}', space=vmem, size = 0x12000, scoped, tag = 'internal scratch']
  #allocation2 [shape = 'f32[1,1]{1,0:T(1,128)S(1)}', space=vmem, size = 0x200, scoped, tag = 'scoped memory for tpu_custom_call.1']
  %s0 = inlined_call_operand.vmem [shape: f32[20,128], index: 0, kind: input, shape index: {}]
  %s1 = inlined_call_operand.vmem [shape: f32[20,128], index: 1, kind: input, shape index: {}]
  %s2 = inlined_call_operand.vmem [shape: s32[20,1], index: 2, kind: input, shape index: {}]
  %s3 = inlined_call_operand.vmem [shape: f32[20,1], index: 3, kind: input, shape index: {}]
  %s4 = inlined_call_operand.vmem [shape: f32[8,128], index: 4, kind: input, shape index: {}]
  %s5 = inlined_call_operand.<no memory space> [shape: f32[1,1], index: 5, kind: input, shape index: {}]
  %s6 = inlined_call_operand.hbm [shape: f32[3,8,128], index: 6, kind: output, shape index: {}]
  %s7 = sld [smem:[#allocation0]]
  $region57: #{tpu_custom_call.1} parent=0
    _
  %s9 = ssub.s32 1, %s7
  %s10 = scalar_select 0, %s9, %s7
  %v11 = vstv %s5
  %12 = vst [vmem:[#allocation2] sm:$0x1] %v11
  $region1: #{tpu_custom_call.1} parent=0
    #allocation3 [shape = 'u8[8192]{0}', space=vmem, size = 0x2000, scoped, tag = 'output window, operand 0']
    #allocation4 [shape = 's32[2]{0}', space=sflag, size = 0x8, scoped, tag = 'scoped memory for tpu_custom_call.1']
    %13 = vsyncpa [#allocation4], 0
    %s14 = scalar_lea.sflag [#allocation4], 1
    %15 = vsyncpa %s14, 0
    loop: start=0, step=1, limit=5
    $region2: #{tpu_custom_call.1} parent=1 // loop_pre_header
      _
    $region3: #{tpu_custom_call.1} parent=1 // loop_header
      %s17 = sphi 0, %s21
      %p18 = scmp.ge.s32.totalorder %s17, 5
      %s27 = sphi 0, %s29
      %s30 = sphi 0, %s27
      %s31 = sphi 0, %s30
      %s47 = sphi 0, %s31
      %s53 = sphi 0, %s55
      %s56 = sphi 0, %s53
      %s57 = sphi 0, %s56
      %s73 = sphi 0, %s57
      %s79 = sphi 0, %s81
      %s82 = sphi 0, %s79
      %s83 = sphi 0, %s82
      %s99 = sphi 0, %s83
      %s105 = sphi 0, %s107
      %s108 = sphi 0, %s105
      %s109 = sphi 0, %s108
      %s125 = sphi 0, %s109
      %s129 = sphi 0, %s129
      %s131 = sphi 0, %s129
      %s132 = sphi 0, %s131
      %s146 = sphi 0, %s132
      %s150 = sphi 0, %s150
      %s152 = sphi 0, %s150
      %s153 = sphi 0, %s152
      %s167 = sphi 0, %s153
      %s173 = sphi 0, %s175
      %s176 = sphi 0, %s173
      %s177 = sphi 0, %s176
      %s193 = sphi 0, %s177
    $region4: #{tpu_custom_call.1} parent=1 // loop_header_branch
      %20 = sbr.rel (%p18) target = $region8
    $region5: #{tpu_custom_call.1} parent=1 // loop_body
      %s22 = ssub.s32 %s17, 1
      %s23 = ssub.s32 %s17, 2
      %s24 = sadd.s32 %s17, 1
      %s25 = ssub.s32 %s17, %s24
      %p26 = scmp.eq.s32.totalorder %s25, 0
      %s28 = sadd.s32 %s27, 1
      %s29 = scalar_select %p26, %s27, %s28
      %p32 = pneg %p26
      %p33 = scmp.eq.s32.totalorder %s17, 2
      %p34 = por %p32, %p33
      %p35 = scmp.ne.s32.totalorder %s27, %s30
      %p36 = scmp.eq.s32.totalorder %s17, 0
      %p37 = por %p35, %p36
      %p38 = scmp.ne.s32.totalorder %s27, %s30
      %p39 = scmp.eq.s32.totalorder %s22, 2
      %p40 = por %p38, %p39
      %p41 = scmp.ne.s32.totalorder %s30, %s31
      %p42 = scmp.eq.s32.totalorder %s22, 0
      %p43 = por %p41, %p42
      %p44 = scmp.ne.s32.totalorder %s30, %s31
      %p45 = scmp.eq.s32.totalorder %s23, 2
      %p46 = por %p44, %p45
      %p48 = scmp.ne.s32.totalorder %s31, %s47
      %p49 = scmp.eq.s32.totalorder %s23, 0
      %p50 = por %p48, %p49
      %s51 = ssub.s32 %s17, %s24
      %p52 = scmp.eq.s32.totalorder %s51, 0
      %s54 = sadd.s32 %s53, 1
      %s55 = scalar_select %p52, %s53, %s54
      %p58 = pneg %p52
      %p59 = scmp.eq.s32.totalorder %s17, 2
      %p60 = por %p58, %p59
      %p61 = scmp.ne.s32.totalorder %s53, %s56
      %p62 = scmp.eq.s32.totalorder %s17, 0
      %p63 = por %p61, %p62
      %p64 = scmp.ne.s32.totalorder %s53, %s56
      %p65 = scmp.eq.s32.totalorder %s22, 2
      %p66 = por %p64, %p65
      %p67 = scmp.ne.s32.totalorder %s56, %s57
      %p68 = scmp.eq.s32.totalorder %s22, 0
      %p69 = por %p67, %p68
      %p70 = scmp.ne.s32.totalorder %s56, %s57
      %p71 = scmp.eq.s32.totalorder %s23, 2
      %p72 = por %p70, %p71
      %p74 = scmp.ne.s32.totalorder %s57, %s73
      %p75 = scmp.eq.s32.totalorder %s23, 0
      %p76 = por %p74, %p75
      %s77 = ssub.s32 %s17, %s24
      %p78 = scmp.eq.s32.totalorder %s77, 0
      %s80 = sadd.s32 %s79, 1
      %s81 = scalar_select %p78, %s79, %s80
      %p84 = pneg %p78
      %p85 = scmp.eq.s32.totalorder %s17, 2
      %p86 = por %p84, %p85
      %p87 = scmp.ne.s32.totalorder %s79, %s82
      %p88 = scmp.eq.s32.totalorder %s17, 0
      %p89 = por %p87, %p88
      %p90 = scmp.ne.s32.totalorder %s79, %s82
      %p91 = scmp.eq.s32.totalorder %s22, 2
      %p92 = por %p90, %p91
      %p93 = scmp.ne.s32.totalorder %s82, %s83
      %p94 = scmp.eq.s32.totalorder %s22, 0
      %p95 = por %p93, %p94
      %p96 = scmp.ne.s32.totalorder %s82, %s83
      %p97 = scmp.eq.s32.totalorder %s23, 2
      %p98 = por %p96, %p97
      %p100 = scmp.ne.s32.totalorder %s83, %s99
      %p101 = scmp.eq.s32.totalorder %s23, 0
      %p102 = por %p100, %p101
      %s103 = ssub.s32 %s17, %s24
      %p104 = scmp.eq.s32.totalorder %s103, 0
      %s106 = sadd.s32 %s105, 1
      %s107 = scalar_select %p104, %s105, %s106
      %p110 = pneg %p104
      %p111 = scmp.eq.s32.totalorder %s17, 2
      %p112 = por %p110, %p111
      %p113 = scmp.ne.s32.totalorder %s105, %s108
      %p114 = scmp.eq.s32.totalorder %s17, 0
      %p115 = por %p113, %p114
      %p116 = scmp.ne.s32.totalorder %s105, %s108
      %p117 = scmp.eq.s32.totalorder %s22, 2
      %p118 = por %p116, %p117
      %p119 = scmp.ne.s32.totalorder %s108, %s109
      %p120 = scmp.eq.s32.totalorder %s22, 0
      %p121 = por %p119, %p120
      %p122 = scmp.ne.s32.totalorder %s108, %s109
      %p123 = scmp.eq.s32.totalorder %s23, 2
      %p124 = por %p122, %p123
      %p126 = scmp.ne.s32.totalorder %s109, %s125
      %p127 = scmp.eq.s32.totalorder %s23, 0
      %p128 = por %p126, %p127
      %s130 = sadd.s32 %s129, 1
      %p133 = scmp.eq.s32.totalorder %s17, 2
      %p134 = scmp.ne.s32.totalorder %s129, %s131
      %p135 = scmp.eq.s32.totalorder %s17, 0
      %p136 = por %p134, %p135
      %p137 = scmp.ne.s32.totalorder %s129, %s131
      %p138 = scmp.eq.s32.totalorder %s22, 2
      %p139 = por %p137, %p138
      %p140 = scmp.ne.s32.totalorder %s131, %s132
      %p141 = scmp.eq.s32.totalorder %s22, 0
      %p142 = por %p140, %p141
      %p143 = scmp.ne.s32.totalorder %s131, %s132
      %p144 = scmp.eq.s32.totalorder %s23, 2
      %p145 = por %p143, %p144
      %p147 = scmp.ne.s32.totalorder %s132, %s146
      %p148 = scmp.eq.s32.totalorder %s23, 0
      %p149 = por %p147, %p148
      %s151 = sadd.s32 %s150, 1
      %p154 = scmp.eq.s32.totalorder %s17, 2
      %p155 = scmp.ne.s32.totalorder %s150, %s152
      %p156 = scmp.eq.s32.totalorder %s17, 0
      %p157 = por %p155, %p156
      %p158 = scmp.ne.s32.totalorder %s150, %s152
      %p159 = scmp.eq.s32.totalorder %s22, 2
      %p160 = por %p158, %p159
      %p161 = scmp.ne.s32.totalorder %s152, %s153
      %p162 = scmp.eq.s32.totalorder %s22, 0
      %p163 = por %p161, %p162
      %p164 = scmp.ne.s32.totalorder %s152, %s153
      %p165 = scmp.eq.s32.totalorder %s23, 2
      %p166 = por %p164, %p165
      %p168 = scmp.ne.s32.totalorder %s153, %s167
      %p169 = scmp.eq.s32.totalorder %s23, 0
      %p170 = por %p168, %p169
      %s171 = ssub.s32 %s17, %s24
      %p172 = scmp.eq.s32.totalorder %s171, 0
      %s174 = sadd.s32 %s173, 1
      %s175 = scalar_select %p172, %s173, %s174
      %p178 = pneg %p172
      %p179 = scmp.eq.s32.totalorder %s17, 2
      %p180 = por %p178, %p179
      %p181 = scmp.ne.s32.totalorder %s173, %s176
      %p182 = scmp.eq.s32.totalorder %s17, 0
      %p183 = por %p181, %p182
      %p184 = scmp.ne.s32.totalorder %s173, %s176
      %p185 = scmp.eq.s32.totalorder %s22, 2
      %p186 = por %p184, %p185
      %p187 = scmp.ne.s32.totalorder %s176, %s177
      %p188 = scmp.eq.s32.totalorder %s22, 0
      %p189 = por %p187, %p188
      %p190 = scmp.ne.s32.totalorder %s176, %s177
      %p191 = scmp.eq.s32.totalorder %s23, 2
      %p192 = por %p190, %p191
      %p194 = scmp.ne.s32.totalorder %s177, %s193
      %p195 = scmp.eq.s32.totalorder %s23, 0
      %p196 = por %p194, %p195
      %p197 = scmp.le.s32.totalorder 1, %s17
      %p198 = scmp.lt.s32.totalorder %s17, 4
      %p199 = pnand %p197, %p198
      %p200 = pneg %p199
      // Predicated region
      $region9: #{tpu_custom_call.1} parent=5 // pred_check
        _
      $region10: #{tpu_custom_call.1} parent=5 // pred_check_branch
        %202 = sbr.rel (%p199) target = $region12
      $region11: #{tpu_custom_call.1} parent=5 // pred_region
        %s203 = ssub.s32 %s17, 1
        // Predicated region
        $region13: #{tpu_custom_call.1} parent=11 // pred_check
          %p204 = pneg %p142
        $region14: #{tpu_custom_call.1} parent=11 // pred_check_branch
          %206 = sbr.rel (%p204) target = $region16
        $region15: #{tpu_custom_call.1} parent=11 // pred_region
          _
        $region16: #{tpu_custom_call.1} parent=11 // pred_fallthru
          _
        // Predicated region
        $region17: #{tpu_custom_call.1} parent=11 // pred_check
          %p207 = pneg %p163
        $region18: #{tpu_custom_call.1} parent=11 // pred_check_branch
          %209 = sbr.rel (%p207) target = $region20
        $region19: #{tpu_custom_call.1} parent=11 // pred_region
          _
        $region20: #{tpu_custom_call.1} parent=11 // pred_fallthru
          _
      $region12: #{tpu_custom_call.1} parent=5 // pred_fallthru
        _
      %p210 = scmp.lt.s32.totalorder %s17, 3
      // Predicated region
      $region21: #{tpu_custom_call.1} parent=5 // pred_check
        %p211 = pneg %p210
      $region22: #{tpu_custom_call.1} parent=5 // pred_check_branch
        %213 = sbr.rel (%p211) target = $region24
      $region23: #{tpu_custom_call.1} parent=5 // pred_region
        // Predicated region
        $region25: #{tpu_custom_call.1} parent=23 // pred_check
          %p214 = pneg %p37
        $region26: #{tpu_custom_call.1} parent=23 // pred_check_branch
          %216 = sbr.rel (%p214) target = $region28
        $region27: #{tpu_custom_call.1} parent=23 // pred_region
          %p217 = scmp.lt.s32.totalorder %s17, 2
          %s218 = scalar_select %p217, %s17, 2
          %s219 = smul.addr %s218, 8
          %s220 = scalar_lea.vmem %s0, %s219
        $region28: #{tpu_custom_call.1} parent=23 // pred_fallthru
          _
        // Predicated region
        $region29: #{tpu_custom_call.1} parent=23 // pred_check
          %p221 = pneg %p63
        $region30: #{tpu_custom_call.1} parent=23 // pred_check_branch
          %223 = sbr.rel (%p221) target = $region32
        $region31: #{tpu_custom_call.1} parent=23 // pred_region
          %p224 = scmp.lt.s32.totalorder %s17, 2
          %s225 = scalar_select %p224, %s17, 2
          %s226 = smul.addr %s225, 8
          %s227 = scalar_lea.vmem %s1, %s226
        $region32: #{tpu_custom_call.1} parent=23 // pred_fallthru
          _
        // Predicated region
        $region33: #{tpu_custom_call.1} parent=23 // pred_check
          %p228 = pneg %p89
        $region34: #{tpu_custom_call.1} parent=23 // pred_check_branch
          %230 = sbr.rel (%p228) target = $region36
        $region35: #{tpu_custom_call.1} parent=23 // pred_region
          %p231 = scmp.lt.s32.totalorder %s17, 2
          %s232 = scalar_select %p231, %s17, 2
          %s233 = smul.addr %s232, 8
          %s234 = scalar_lea.vmem %s2, %s233
        $region36: #{tpu_custom_call.1} parent=23 // pred_fallthru
          _
        // Predicated region
        $region37: #{tpu_custom_call.1} parent=23 // pred_check
          %p235 = pneg %p115
        $region38: #{tpu_custom_call.1} parent=23 // pred_check_branch
          %237 = sbr.rel (%p235) target = $region40
        $region39: #{tpu_custom_call.1} parent=23 // pred_region
          %p238 = scmp.lt.s32.totalorder %s17, 2
          %s239 = scalar_select %p238, %s17, 2
          %s240 = smul.addr %s239, 8
          %s241 = scalar_lea.vmem %s3, %s240
        $region40: #{tpu_custom_call.1} parent=23 // pred_fallthru
          _
      $region24: #{tpu_custom_call.1} parent=5 // pred_fallthru
        _
      %p242 = scmp.le.s32.totalorder 1, %s17
      %p243 = scmp.lt.s32.totalorder %s17, 4
      %p244 = pnand %p242, %p243
      %p245 = pneg %p244
      // Predicated region
      $region41: #{tpu_custom_call.1} parent=5 // pred_check
        _
      $region42: #{tpu_custom_call.1} parent=5 // pred_check_branch
        %247 = sbr.rel (%p244) target = $region44
      $region43: #{tpu_custom_call.1} parent=5 // pred_region
        %s248 = ssub.s32 %s17, 1
        %p249 = scmp.lt.s32.totalorder %s22, 2
        %s250 = scalar_select %p249, %s22, 2
        %s251 = smul.addr %s250, 8
        %s252 = scalar_lea.vmem %s0, %s251
        %p253 = pneg %p43
        %p254 = pneg %p40
        %p255 = scmp.lt.s32.totalorder %s22, 2
        %s256 = scalar_select %p255, %s22, 2
        %s257 = smul.addr %s256, 8
        %s258 = scalar_lea.vmem %s1, %s257
        %p259 = pneg %p69
        %p260 = pneg %p66
        %p261 = scmp.lt.s32.totalorder %s22, 2
        %s262 = scalar_select %p261, %s22, 2
        %s263 = smul.addr %s262, 8
        %s264 = scalar_lea.vmem %s2, %s263
        %p265 = pneg %p95
        %p266 = pneg %p92
        %p267 = scmp.lt.s32.totalorder %s22, 2
        %s268 = scalar_select %p267, %s22, 2
        %s269 = smul.addr %s268, 8
        %s270 = scalar_lea.vmem %s3, %s269
        %p271 = pneg %p121
        %p272 = pneg %p118
        %p273 = pneg %p142
        %p274 = pneg %p139
        %p275 = pneg %p163
        %p276 = pneg %p160
        %p277 = pneg %p189
        %p278 = pneg %p186
        %s279 = sand.u32 %s176, 1
        %s280 = scalar_lea.sflag [#allocation4], %s279
        %s281 = sand.u32 %s176, 1
        %s282 = smul.addr %s281, 8
        %s283 = scalar_lea.vmem [#allocation3], %s282
        %p284 = scmp.lt.s32.totalorder %s22, 2
        %s285 = scalar_select %p284, %s22, 2
        %s286 = smul.addr %s285, 8
        %s287 = scalar_lea.vmem %s0, %s286
        %p288 = scmp.lt.s32.totalorder %s22, 2
        %s289 = scalar_select %p288, %s22, 2
        %s290 = smul.addr %s289, 8
        %s291 = scalar_lea.vmem %s1, %s290
        %p292 = scmp.lt.s32.totalorder %s22, 2
        %s293 = scalar_select %p292, %s22, 2
        %s294 = smul.addr %s293, 8
        %s295 = scalar_lea.vmem %s2, %s294
        %p296 = scmp.lt.s32.totalorder %s22, 2
        %s297 = scalar_select %p296, %s22, 2
        %s298 = smul.addr %s297, 8
        %s299 = scalar_lea.vmem %s3, %s298
        %v300 = vld [vmem:[%s287] sm:$0xff]
        %v301 = vld [vmem:[%s291] sm:$0xff]
        %v302 = vsub.f32 %v300, %v301
        %v303 = vand.u32 2147483647, %v302
        %v304 = vlaneseq
        %v305 = vand.u32 %v304, 127
        %v306 = vld [vmem:[%s295] sm:$0xff]
        %307 = vset.pattern.permute.xlu0 0
        %308 = vperm.xlu0 %307, %v306
        %v309 = vpop.permute.xlu0 %308
        %vm310 = vcmp.eq.s32.totalorder %v305, %v309
        %v311 = vsel %vm310, 1, 0
        %v312 = vcvt.s32.f32 %v311
        %v313 = vld [vmem:[%s4] sm:$0xff]
        %vm314 = vcmask 64512
        %v316 = vsel %vm314, %v312, 0
        %318 = vmatprep.subr.mxu0 0.0
        %319 = vmatpush1.msra.mxu0 0.0
        %320 = vmatprep.subr.mxu0 0.0
        %321 = vmatpush1.msra.mxu0 0.0
        %322 = vmatprep.subr.mxu0 0.0
        %323 = vmatpush1.msra.mxu0 0.0
        %324 = vmatprep.subr.mxu0 0.0
        %325 = vmatpush1.msra.mxu0 0.0
        %326 = vmatprep.subr.mxu0 0.0
        %327 = vmatpush1.msra.mxu0 0.0
        %328 = vmatprep.subr.mxu0 0.0
        %329 = vmatpush1.msra.mxu0 0.0
        %330 = vmatprep.subr.mxu0 0.0
        %331 = vmatpush1.msra.mxu0 0.0
        %332 = vmatprep.subr.mxu0 0.0
        %333 = vmatpush1.msra.mxu0 0.0
        %334 = vmatprep.subr.mxu0 0.0
        %335 = vmatpush1.msra.mxu0 0.0
        %336 = vmatprep.subr.mxu0 0.0
        %337 = vmatpush1.msra.mxu0 0.0
        %338 = vmatprep.subr.mxu0 0.0
        %339 = vmatpush1.msra.mxu0 0.0
        %340 = vmatprep.subr.mxu0 0.0
        %341 = vmatpush1.msra.mxu0 0.0
        %342 = vmatprep.subr.mxu0 0.0
        %343 = vmatpush1.msra.mxu0 0.0
        %344 = vmatprep.subr.mxu0 0.0
        %345 = vmatpush1.msra.mxu0 0.0
        %346 = vmatprep.subr.mxu0 0.0
        %347 = vmatpush1.msra.mxu0 0.0
        %348 = vmatprep.subr.mxu0 0.0
        %349 = vmatpush1.msra.mxu0 %v313
        %350 = vmatprep.subr.mxu0 0.0
        %351 = vmatpush2.msra.mxu0 0.0
        %352 = vmatprep.subr.mxu0 0.0
        %353 = vmatpush2.msra.mxu0 0.0
        %354 = vmatprep.subr.mxu0 0.0
        %355 = vmatpush2.msra.mxu0 0.0
        %356 = vmatprep.subr.mxu0 0.0
        %357 = vmatpush2.msra.mxu0 0.0
        %358 = vmatprep.subr.mxu0 0.0
        %359 = vmatpush2.msra.mxu0 0.0
        %360 = vmatprep.subr.mxu0 0.0
        %361 = vmatpush2.msra.mxu0 0.0
        %362 = vmatprep.subr.mxu0 0.0
        %363 = vmatpush2.msra.mxu0 0.0
        %364 = vmatprep.subr.mxu0 0.0
        %365 = vmatpush2.msra.mxu0 0.0
        %366 = vmatprep.subr.mxu0 0.0
        %367 = vmatpush2.msra.mxu0 0.0
        %368 = vmatprep.subr.mxu0 0.0
        %369 = vmatpush2.msra.mxu0 0.0
        %370 = vmatprep.subr.mxu0 0.0
        %371 = vmatpush2.msra.mxu0 0.0
        %372 = vmatprep.subr.mxu0 0.0
        %373 = vmatpush2.msra.mxu0 0.0
        %374 = vmatprep.subr.mxu0 0.0
        %375 = vmatpush2.msra.mxu0 0.0
        %376 = vmatprep.subr.mxu0 0.0
        %377 = vmatpush2.msra.mxu0 0.0
        %378 = vmatprep.subr.mxu0 0.0
        %379 = vmatpush2.msra.mxu0 0.0
        %380 = vmatprep.subr.mxu0 0.0
        %381 = vmatpush2.msra.mxu0 0.0
        %382 = vmatprep.mubr.f32.mxu0 0.0
        %383 = vmatmul.mubr.f32.gmra.mxu0 %v316
        %v384 = vpop.f32.mrf.mxu0
        %v385 = vadd.f32 0.0, %v384
        %v386 = vpop.f32.mrf.mxu0
        %387 = vdwg.mxu0
        %v388 = vmul.f32 %v303, %v385
        %389 = vadd.xlane.f32.xlu0 %v388
        %v390 = vpop.xlane.xlu0 %389
        %v391 = vld [vmem:[#allocation2] sm:$0x1]
        %v393 = vlaneseq
        %v394 = vshrl.u32 %v393, 7
        %v395 = vsub.s32 0, %v394
        %v396 = vrot.slane %v391, %v395
        %v398 = vadd.f32 %v390, %v396
        %v399 = vld [vmem:[%s299] sm:$0xff]
        %v400 = vmax.f32 %v398, 0.0
        %v401 = vmul.f32 %v398, %v399
        %v402 = vsub.f32 %v400, %v401
        %v403 = vand.u32 2147483647, %v398
        %v404 = vsub.f32 0.0, %v403
        %v405 = vmul.f32 %v404, 1.442695
        %v406 = vpow.pop %v405
        %v407 = vadd.f32 %v406, 1.0
        %v408 = vlog2.pop %v407
        %v409 = vmul.f32 %v408, 0.6931472
        %v410 = vmul.f32 -0.5, %v406
        %v411 = vadd.f32 %v410, 1.0
        %v412 = vmul.f32 %v411, %v406
        %v413 = vand.u32 2147483647, %v406
        %vm414 = vcmp.lt.f32.partialorder %v413, 0.0004427343
        %v415 = vsel %vm414, %v412, %v409
        %v416 = vadd.f32 %v402, %v415
        %s417 = smul.u32 %s22, 8
        %v418 = vlaneseq
        %v419 = vshrl.u32 %v418, 7
        %v420 = vstv %s417
        %v421 = vadd.s32 %v420, %v419
        %vm422 = vcmp.lt.s32.totalorder %v421, 20
        %v423 = vsel %vm422, %v416, 0.0
        %vm424 = vcmask 7168
        %v425 = vsel %vm424, %v423, 0.0
        %426 = vadd.xlane.f32.xlu0 %v425
        %v427 = vpop.xlane.xlu0 %426
        %v428 = vrot.slane %v427, 4
        %v429 = vadd.f32 %v427, %v428
        %v430 = vrot.slane %v429, 2
        %v431 = vadd.f32 %v429, %v430
        %v432 = vrot.slane %v431, 1
        %v433 = vadd.f32 %v431, %v432
        %s434 = vtos %v433
        %v435 = vstv %s434
        %436 = vst [vmem:[%s283] sm:$0xff] %v435
        %s437 = sand.u32 %s176, 1
        %s438 = scalar_lea.sflag [#allocation4], %s437
        %s439 = sand.u32 %s176, 1
        %s440 = smul.addr %s439, 8
        %s441 = scalar_lea.vmem [#allocation3], %s440
        // Predicated region
        $region45: #{tpu_custom_call.1} parent=43 // pred_check
          %p442 = pneg %p186
        $region46: #{tpu_custom_call.1} parent=43 // pred_check_branch
          %444 = sbr.rel (%p442) target = $region48
        $region47: #{tpu_custom_call.1} parent=43 // pred_region
          %s446 = ssub.s32 128, 128
          %447 = vsyncadd %s438, %s446
          %s448 = smul.addr %s22, 128
          %s449 = scalar_lea.hbm %s6, %s448
          %s451 = sshll.u32 %s441, 4
          %s452 = int_to_ptr.vmem [resolvable:$true] %s451
          %454 = dma.vmem_to_hbm [thread:$0]  %s452, 128, %s449, %s438
        $region48: #{tpu_custom_call.1} parent=43 // pred_fallthru
          _
      $region44: #{tpu_custom_call.1} parent=5 // pred_fallthru
        _
      %p455 = scmp.le.s32.totalorder 2, %s17
      // Predicated region
      $region49: #{tpu_custom_call.1} parent=5 // pred_check
        %p456 = pneg %p455
      $region50: #{tpu_custom_call.1} parent=5 // pred_check_branch
        %458 = sbr.rel (%p456) target = $region52
      $region51: #{tpu_custom_call.1} parent=5 // pred_region
        %s459 = ssub.s32 %s17, 2
        // Predicated region
        $region53: #{tpu_custom_call.1} parent=51 // pred_check
          %p460 = pneg %p192
        $region54: #{tpu_custom_call.1} parent=51 // pred_check_branch
          %462 = sbr.rel (%p460) target = $region56
        $region55: #{tpu_custom_call.1} parent=51 // pred_region
          %s463 = sand.u32 %s177, 1
          %s464 = scalar_lea.sflag [#allocation4], %s463
          %s465 = sand.u32 %s177, 1
          %s466 = smul.addr %s465, 8
          %s467 = scalar_lea.vmem [#allocation3], %s466
          %468 = dma.done %s464, 128
        $region56: #{tpu_custom_call.1} parent=51 // pred_fallthru
          _
      $region52: #{tpu_custom_call.1} parent=5 // pred_fallthru
        _
    $region6: #{tpu_custom_call.1} parent=1 // loop_footer
      %s21 = sadd.s32 1, %s17
    $region7: #{tpu_custom_call.1} parent=1 // loop_footer_branch
      %16 = sbr.rel target = $region3
    $region8: #{tpu_custom_call.1} parent=1 // loop_exit
      _
    %469 = vsyncpa [#allocation4], 1
    %s470 = scalar_lea.sflag [#allocation4], 1
    %471 = vsyncpa %s470, 1

</llo_original>
